<compile_context>
chip_gen: v5e
topology: v5e:2x2
jax: 0.10.0
libtpu: 0.0.40
codegen_flags: <defaults>
</compile_context>

<pallas_src>
import functools

import jax
import jax.numpy as jnp
from jax import lax
from jax.experimental import pallas as pl
from jax.experimental.pallas import tpu as pltpu

NEG_SLOPE = 0.01  # nn.LeakyReLU default


def _leaky(x):
    # max(x, a*x) == LeakyReLU(x) for 0 < a < 1 (one mul + one max on the VPU).
    return jnp.maximum(x, NEG_SLOPE * x)


def _conv_block_kernel(x_ref, wd_ref, wp_ref, o_ref, *, H, W, C_in, C_out):
    """One batch element per grid step, channel-major, flattened spatial dims.

    x_ref  : (1, C_in, H*W)   input block (VMEM), lane-dense flattened plane
    wd_ref : (C_in, 9)        depthwise 3x3 weights, [c, ki*3 + kj]
    wp_ref : (C_out, C_in)    pointwise 1x1 weights, [co, ci]
    o_ref  : (1, C_out, H*W)  output block (VMEM)
    """
    HW = H * W
    xs = x_ref[0]          # (C_in, HW): all input channels, channels = sublanes
    wd = wd_ref[...]       # (C_in, 9)
    wp = wp_ref[...]       # (C_out, C_in)

    # Flat lane index and image-border masks (computed once per grid step).
    p = lax.broadcasted_iota(jnp.int32, (C_in, HW), 1)
    if W & (W - 1) == 0:                      # power-of-two W: bitwise AND
        w_idx = jnp.bitwise_and(p, W - 1)
    else:                                     # general W
        w_idx = p % W
    not_first_col = w_idx != 0                # left neighbour exists
    not_last_col = w_idx != (W - 1)           # right neighbour exists
    not_first_row = p >= W                    # up neighbour exists
    not_last_row = p < (HW - W)               # down neighbour exists

    # Column taps: left/right neighbour value at every position, shared by all
    # three kernel rows.  Circular lane rolls + zeroing of the wrapped column.
    x_l = jnp.where(not_first_col, pltpu.roll(xs, 1, 1), 0.0)        # x[c,h,w-1]
    x_r = jnp.where(not_last_col, pltpu.roll(xs, HW - 1, 1), 0.0)    # x[c,h,w+1]

    # Per kernel-row combination over the 3 column taps.  Weights are (C_in,1)
    # columns -> per-channel scalar * plane FMAs on the VPU (no MXU).
    def row_sum(ki):
        return (wd[:, 3 * ki + 0:3 * ki + 1] * x_l
                + wd[:, 3 * ki + 1:3 * ki + 2] * xs
                + wd[:, 3 * ki + 2:3 * ki + 3] * x_r)

    s_up = row_sum(0)      # needs x row h-1
    s_mid = row_sum(1)     # row h
    s_dn = row_sum(2)      # row h+1

    # Row taps: in the flattened layout a +/-1 row shift is a +/-W lane roll.
    y = (s_mid
         + jnp.where(not_first_row, pltpu.roll(s_up, W, 1), 0.0)
         + jnp.where(not_last_row, pltpu.roll(s_dn, HW - W, 1), 0.0))
    y = _leaky(y)                              # (C_in, HW), stays in vregs

    # Pointwise 1x1 conv fused in: C_in FMAs on dense (C_out, HW) slabs.
    acc = wp[:, 0:1] * jnp.broadcast_to(y[0:1, :], (C_out, HW))
    for ci in range(1, C_in):
        acc = acc + wp[:, ci:ci + 1] * jnp.broadcast_to(y[ci:ci + 1, :], (C_out, HW))
    o_ref[0] = _leaky(acc)                     # single dense (C_out, HW) store


@jax.jit
def conv_block_pallas(x_nchw, w_dw, w_pw):
    """Forward pass of Conv_Block (eval mode).

    x_nchw : (N, C_in, H, W)      float32, NCHW (PyTorch convention)
    w_dw   : (C_in, 1, 3, 3)      depthwise conv weight (torch OIHW, groups=C_in)
    w_pw   : (C_out, C_in, 1, 1)  pointwise conv weight (torch OIHW)
    returns: (N, C_out, H, W)
    """
    N, C_in, H, W = x_nchw.shape
    C_out = w_pw.shape[0]
    HW = H * W

    # Contiguous reshapes only (no transpose, no pad): layout in HBM unchanged.
    x_flat = x_nchw.reshape(N, C_in, HW).astype(jnp.float32)
    wd2 = w_dw.reshape(C_in, 9).astype(jnp.float32)       # [c, ki*3 + kj]
    wp2 = w_pw.reshape(C_out, C_in).astype(jnp.float32)   # [co, ci]

    kernel = functools.partial(
        _conv_block_kernel, H=H, W=W, C_in=C_in, C_out=C_out)

    out_flat = pl.pallas_call(
        kernel,
        out_shape=jax.ShapeDtypeStruct((N, C_out, HW), jnp.float32),
        grid_spec=pltpu.PrefetchScalarGridSpec(
            num_scalar_prefetch=0,
            grid=(N,),
            in_specs=[
                pl.BlockSpec((1, C_in, HW), lambda n: (n, 0, 0)),
                pl.BlockSpec((C_in, 9), lambda n: (0, 0)),
                pl.BlockSpec((C_out, C_in), lambda n: (0, 0)),
            ],
            out_specs=pl.BlockSpec((1, C_out, HW), lambda n: (n, 0, 0)),
        ),
        compiler_params=pltpu.CompilerParams(
            dimension_semantics=("parallel",),
            vmem_limit_bytes=32 * 1024 * 1024),
    )(x_flat, wd2, wp2)

    return out_flat.reshape(N, C_out, H, W)


def conv_block_reference(x_nchw, w_dw, w_pw):
    """Plain-JAX reference (matches PyTorch eval-mode forward, bias=False)."""
    C_in = x_nchw.shape[1]
    y = lax.conv_general_dilated(
        x_nchw, w_dw, window_strides=(1, 1), padding="SAME",
        feature_group_count=C_in,
        dimension_numbers=("NCHW", "OIHW", "NCHW"))
    y = _leaky(y)
    y = lax.conv_general_dilated(
        y, w_pw, window_strides=(1, 1), padding="VALID",
        dimension_numbers=("NCHW", "OIHW", "NCHW"))
    return _leaky(y)


if __name__ == "__main__":
    N, C_in, C_out, H, W = 2, 4, 8, 16, 16

    key = jax.random.PRNGKey(0)
    k_x, k_dw, k_pw = jax.random.split(key, 3)

    x = jax.random.normal(k_x, (N, C_in, H, W), dtype=jnp.float32)
    # Deterministic synthetic weights (shapes from the module's __init__, bias=False).
    w_dw = jax.random.normal(k_dw, (C_in, 1, 3, 3), dtype=jnp.float32) * 0.2
    w_pw = jax.random.normal(k_pw, (C_out, C_in, 1, 1), dtype=jnp.float32) * 0.2

    out = jax.block_until_ready(conv_block_pallas(x, w_dw, w_pw))

    ref = conv_block_reference(x, w_dw, w_pw)
    assert out.shape == (N, C_out, H, W)
    assert jnp.allclose(out, ref, atol=2e-5, rtol=2e-5), "mismatch vs reference"

    print("KERNEL_OK")
</pallas_src>

<mosaic_0001>
module attributes {stable_mosaic.version = 11 : i64} {
  func.func @_conv_block_kernel(%arg0: i32, %arg1: memref<1x4x256xf32, #tpu.memory_space<vmem>>, %arg2: memref<4x9xf32, #tpu.memory_space<vmem>>, %arg3: memref<8x4xf32, #tpu.memory_space<vmem>>, %arg4: memref<1x8x256xf32, #tpu.memory_space<vmem>>) attributes {dimension_semantics = [#tpu.dimension_semantics<parallel>], iteration_bounds = array<i64: 2>, scalar_prefetch = 0 : i64, scratch_operands = 0 : i64, tpu.core_type = #tpu.core_type<tc>, window_params = [{transform_indices = @transform_0, window_bounds = array<i64: 1, 4, 256>}, {pipeline_mode = #tpu.pipeline_mode<synchronous>, transform_indices = @transform_1, window_bounds = array<i64: 4, 9>}, {pipeline_mode = #tpu.pipeline_mode<synchronous>, transform_indices = @transform_2, window_bounds = array<i64: 8, 4>}, {transform_indices = @transform_3, window_bounds = array<i64: 1, 8, 256>}]} {
    %c0 = arith.constant 0 : index
    %c0_0 = arith.constant 0 : index
    %c0_1 = arith.constant 0 : index
    %0 = vector.load %arg1[%c0, %c0_0, %c0_1] : memref<1x4x256xf32, #tpu.memory_space<vmem>>, vector<1x4x256xf32>
    %1 = vector.shape_cast %0 : vector<1x4x256xf32> to vector<4x256xf32>
    %c0_2 = arith.constant 0 : index
    %c0_3 = arith.constant 0 : index
    %2 = vector.load %arg2[%c0_2, %c0_3] : memref<4x9xf32, #tpu.memory_space<vmem>>, vector<4x9xf32>
    %c0_4 = arith.constant 0 : index
    %c0_5 = arith.constant 0 : index
    %3 = vector.load %arg3[%c0_4, %c0_5] : memref<8x4xf32, #tpu.memory_space<vmem>>, vector<8x4xf32>
    %4 = tpu.iota {dimensions = array<i32: 1>} : vector<4x256xi32>
    %c15_i32 = arith.constant 15 : i32
    %5 = vector.broadcast %c15_i32 : i32 to vector<4x256xi32>
    %6 = arith.andi %4, %5 : vector<4x256xi32>
    %c0_i32 = arith.constant 0 : i32
    %7 = vector.broadcast %c0_i32 : i32 to vector<4x256xi32>
    %8 = arith.cmpi ne, %6, %7 : vector<4x256xi32>
    %c15_i32_6 = arith.constant 15 : i32
    %9 = vector.broadcast %c15_i32_6 : i32 to vector<4x256xi32>
    %10 = arith.cmpi ne, %6, %9 : vector<4x256xi32>
    %c16_i32 = arith.constant 16 : i32
    %11 = vector.broadcast %c16_i32 : i32 to vector<4x256xi32>
    %12 = arith.cmpi sge, %4, %11 : vector<4x256xi32>
    %c240_i32 = arith.constant 240 : i32
    %13 = vector.broadcast %c240_i32 : i32 to vector<4x256xi32>
    %14 = arith.cmpi slt, %4, %13 : vector<4x256xi32>
    %c1_i32 = arith.constant 1 : i32
    %15 = tpu.dynamic_rotate %1 by %c1_i32 dim 1 : vector<4x256xf32>, i32 -> vector<4x256xf32>
    %cst = arith.constant 0.000000e+00 : f32
    %16 = vector.broadcast %cst : f32 to vector<4x256xf32>
    %17 = arith.select %8, %15, %16 : vector<4x256xi1>, vector<4x256xf32>
    %c255_i32 = arith.constant 255 : i32
    %18 = tpu.dynamic_rotate %1 by %c255_i32 dim 1 : vector<4x256xf32>, i32 -> vector<4x256xf32>
    %cst_7 = arith.constant 0.000000e+00 : f32
    %19 = vector.broadcast %cst_7 : f32 to vector<4x256xf32>
    %20 = arith.select %10, %18, %19 : vector<4x256xi1>, vector<4x256xf32>
    %21 = vector.extract_strided_slice %2 {offsets = [0, 0], sizes = [4, 1], strides = [1, 1]} : vector<4x9xf32> to vector<4x1xf32>
    %22 = vector.broadcast %21 : vector<4x1xf32> to vector<4x256xf32>
    %23 = arith.mulf %22, %17 : vector<4x256xf32>
    %24 = vector.extract_strided_slice %2 {offsets = [0, 1], sizes = [4, 1], strides = [1, 1]} : vector<4x9xf32> to vector<4x1xf32>
    %25 = vector.broadcast %24 : vector<4x1xf32> to vector<4x256xf32>
    %26 = arith.mulf %25, %1 : vector<4x256xf32>
    %27 = arith.addf %23, %26 : vector<4x256xf32>
    %28 = vector.extract_strided_slice %2 {offsets = [0, 2], sizes = [4, 1], strides = [1, 1]} : vector<4x9xf32> to vector<4x1xf32>
    %29 = vector.broadcast %28 : vector<4x1xf32> to vector<4x256xf32>
    %30 = arith.mulf %29, %20 : vector<4x256xf32>
    %31 = arith.addf %27, %30 : vector<4x256xf32>
    %32 = vector.extract_strided_slice %2 {offsets = [0, 3], sizes = [4, 1], strides = [1, 1]} : vector<4x9xf32> to vector<4x1xf32>
    %33 = vector.broadcast %32 : vector<4x1xf32> to vector<4x256xf32>
    %34 = arith.mulf %33, %17 : vector<4x256xf32>
    %35 = vector.extract_strided_slice %2 {offsets = [0, 4], sizes = [4, 1], strides = [1, 1]} : vector<4x9xf32> to vector<4x1xf32>
    %36 = vector.broadcast %35 : vector<4x1xf32> to vector<4x256xf32>
    %37 = arith.mulf %36, %1 : vector<4x256xf32>
    %38 = arith.addf %34, %37 : vector<4x256xf32>
    %39 = vector.extract_strided_slice %2 {offsets = [0, 5], sizes = [4, 1], strides = [1, 1]} : vector<4x9xf32> to vector<4x1xf32>
    %40 = vector.broadcast %39 : vector<4x1xf32> to vector<4x256xf32>
    %41 = arith.mulf %40, %20 : vector<4x256xf32>
    %42 = arith.addf %38, %41 : vector<4x256xf32>
    %43 = vector.extract_strided_slice %2 {offsets = [0, 6], sizes = [4, 1], strides = [1, 1]} : vector<4x9xf32> to vector<4x1xf32>
    %44 = vector.broadcast %43 : vector<4x1xf32> to vector<4x256xf32>
    %45 = arith.mulf %44, %17 : vector<4x256xf32>
    %46 = vector.extract_strided_slice %2 {offsets = [0, 7], sizes = [4, 1], strides = [1, 1]} : vector<4x9xf32> to vector<4x1xf32>
    %47 = vector.broadcast %46 : vector<4x1xf32> to vector<4x256xf32>
    %48 = arith.mulf %47, %1 : vector<4x256xf32>
    %49 = arith.addf %45, %48 : vector<4x256xf32>
    %50 = vector.extract_strided_slice %2 {offsets = [0, 8], sizes = [4, 1], strides = [1, 1]} : vector<4x9xf32> to vector<4x1xf32>
    %51 = vector.broadcast %50 : vector<4x1xf32> to vector<4x256xf32>
    %52 = arith.mulf %51, %20 : vector<4x256xf32>
    %53 = arith.addf %49, %52 : vector<4x256xf32>
    %c16_i32_8 = arith.constant 16 : i32
    %54 = tpu.dynamic_rotate %31 by %c16_i32_8 dim 1 : vector<4x256xf32>, i32 -> vector<4x256xf32>
    %cst_9 = arith.constant 0.000000e+00 : f32
    %55 = vector.broadcast %cst_9 : f32 to vector<4x256xf32>
    %56 = arith.select %12, %54, %55 : vector<4x256xi1>, vector<4x256xf32>
    %57 = arith.addf %42, %56 : vector<4x256xf32>
    %c240_i32_10 = arith.constant 240 : i32
    %58 = tpu.dynamic_rotate %53 by %c240_i32_10 dim 1 : vector<4x256xf32>, i32 -> vector<4x256xf32>
    %cst_11 = arith.constant 0.000000e+00 : f32
    %59 = vector.broadcast %cst_11 : f32 to vector<4x256xf32>
    %60 = arith.select %14, %58, %59 : vector<4x256xi1>, vector<4x256xf32>
    %61 = arith.addf %57, %60 : vector<4x256xf32>
    %cst_12 = arith.constant 0.00999999977 : f32
    %62 = vector.broadcast %cst_12 : f32 to vector<4x256xf32>
    %63 = arith.mulf %62, %61 : vector<4x256xf32>
    %64 = arith.maximumf %61, %63 : vector<4x256xf32>
    %65 = vector.extract_strided_slice %3 {offsets = [0, 0], sizes = [8, 1], strides = [1, 1]} : vector<8x4xf32> to vector<8x1xf32>
    %66 = vector.extract_strided_slice %64 {offsets = [0, 0], sizes = [1, 256], strides = [1, 1]} : vector<4x256xf32> to vector<1x256xf32>
    %67 = vector.shape_cast %66 : vector<1x256xf32> to vector<1x256xf32>
    %68 = vector.broadcast %67 : vector<1x256xf32> to vector<8x256xf32>
    %69 = vector.broadcast %65 : vector<8x1xf32> to vector<8x256xf32>
    %70 = arith.mulf %69, %68 : vector<8x256xf32>
    %71 = vector.extract_strided_slice %3 {offsets = [0, 1], sizes = [8, 1], strides = [1, 1]} : vector<8x4xf32> to vector<8x1xf32>
    %72 = vector.extract_strided_slice %64 {offsets = [1, 0], sizes = [1, 256], strides = [1, 1]} : vector<4x256xf32> to vector<1x256xf32>
    %73 = vector.shape_cast %72 : vector<1x256xf32> to vector<1x256xf32>
    %74 = vector.broadcast %73 : vector<1x256xf32> to vector<8x256xf32>
    %75 = vector.broadcast %71 : vector<8x1xf32> to vector<8x256xf32>
    %76 = arith.mulf %75, %74 : vector<8x256xf32>
    %77 = arith.addf %70, %76 : vector<8x256xf32>
    %78 = vector.extract_strided_slice %3 {offsets = [0, 2], sizes = [8, 1], strides = [1, 1]} : vector<8x4xf32> to vector<8x1xf32>
    %79 = vector.extract_strided_slice %64 {offsets = [2, 0], sizes = [1, 256], strides = [1, 1]} : vector<4x256xf32> to vector<1x256xf32>
    %80 = vector.shape_cast %79 : vector<1x256xf32> to vector<1x256xf32>
    %81 = vector.broadcast %80 : vector<1x256xf32> to vector<8x256xf32>
    %82 = vector.broadcast %78 : vector<8x1xf32> to vector<8x256xf32>
    %83 = arith.mulf %82, %81 : vector<8x256xf32>
    %84 = arith.addf %77, %83 : vector<8x256xf32>
    %85 = vector.extract_strided_slice %3 {offsets = [0, 3], sizes = [8, 1], strides = [1, 1]} : vector<8x4xf32> to vector<8x1xf32>
    %86 = vector.extract_strided_slice %64 {offsets = [3, 0], sizes = [1, 256], strides = [1, 1]} : vector<4x256xf32> to vector<1x256xf32>
    %87 = vector.shape_cast %86 : vector<1x256xf32> to vector<1x256xf32>
    %88 = vector.broadcast %87 : vector<1x256xf32> to vector<8x256xf32>
    %89 = vector.broadcast %85 : vector<8x1xf32> to vector<8x256xf32>
    %90 = arith.mulf %89, %88 : vector<8x256xf32>
    %91 = arith.addf %84, %90 : vector<8x256xf32>
    %cst_13 = arith.constant 0.00999999977 : f32
    %92 = vector.broadcast %cst_13 : f32 to vector<8x256xf32>
    %93 = arith.mulf %92, %91 : vector<8x256xf32>
    %94 = arith.maximumf %91, %93 : vector<8x256xf32>
    %c0_14 = arith.constant 0 : index
    %c0_15 = arith.constant 0 : index
    %c0_16 = arith.constant 0 : index
    %95 = vector.load %arg4[%c0_14, %c0_15, %c0_16] : memref<1x8x256xf32, #tpu.memory_space<vmem>>, vector<1x8x256xf32>
    %96 = vector.shape_cast %95 : vector<1x8x256xf32> to vector<8x256xf32>
    %97 = vector.shape_cast %94 : vector<8x256xf32> to vector<1x8x256xf32>
    tpu.vector_store %arg4[%c0_14, %c0_15, %c0_16], %97 {strides = array<i32>} : memref<1x8x256xf32, #tpu.memory_space<vmem>>, vector<1x8x256xf32>,
    return
  }
  func.func @transform_0(%arg0: i32) -> (i32, i32, i32) {
    %c0_i32 = arith.constant 0 : i32
    %c0_i32_0 = arith.constant 0 : i32
    %c0_i32_1 = arith.constant 0 : i32
    return %arg0, %c0_i32, %c0_i32_0 : i32, i32, i32
  }
  func.func @transform_1(%arg0: i32) -> (i32, i32) {
    %c0_i32 = arith.constant 0 : i32
    %c0_i32_0 = arith.constant 0 : i32
    %c0_i32_1 = arith.constant 0 : i32
    return %c0_i32, %c0_i32_0 : i32, i32
  }
  func.func @transform_2(%arg0: i32) -> (i32, i32) {
    %c0_i32 = arith.constant 0 : i32
    %c0_i32_0 = arith.constant 0 : i32
    %c0_i32_1 = arith.constant 0 : i32
    return %c0_i32, %c0_i32_0 : i32, i32
  }
  func.func @transform_3(%arg0: i32) -> (i32, i32, i32) {
    %c0_i32 = arith.constant 0 : i32
    %c0_i32_0 = arith.constant 0 : i32
    %c0_i32_1 = arith.constant 0 : i32
    return %arg0, %c0_i32, %c0_i32_0 : i32, i32, i32
  }
}

</mosaic_0001>

<llo_original>
// kernel: conv_block_pallas.1
$region0: #{conv_block_pallas.1}
  #allocation0 [shape = 'u32[]', space=smem, size = 0x4, offset = 0x4, fixed_abs, tag = 'smem constant byte address 0x4 - core index']
  #allocation1 [shape = 'u32[72,128]{1,0:T(1,128)}', space=vmem, size = 0x9000, scoped, tag = 'internal scratch']
  %s0 = inlined_call_operand.vmem [shape: f32[2,4,256], index: 0, kind: input, shape index: {}]
  %s1 = inlined_call_operand.vmem [shape: f32[4,9], index: 1, kind: input, shape index: {}]
  %s2 = inlined_call_operand.vmem [shape: f32[8,4], index: 2, kind: input, shape index: {}]
  %s3 = inlined_call_operand.vmem [shape: f32[2,8,256], index: 3, kind: output, shape index: {}]
  %s4 = sld [smem:[#allocation0]]
  $region45: #{conv_block_pallas.1} parent=0
    _
  %s6 = ssub.s32 1, %s4
  %s7 = scalar_select 0, %s6, %s4
  loop: start=0, step=1, limit=4
  $region2: #{conv_block_pallas.1} parent=0 // loop_pre_header
    _
  $region3: #{conv_block_pallas.1} parent=0 // loop_header
    %s9 = sphi 0, %s13
    %p10 = scmp.ge.s32.totalorder %s9, 4
    %s19 = sphi 0, %s21
    %s22 = sphi 0, %s19
    %s23 = sphi 0, %s22
    %s39 = sphi 0, %s23
    %s43 = sphi 0, %s43
    %s45 = sphi 0, %s43
    %s46 = sphi 0, %s45
    %s60 = sphi 0, %s46
    %s64 = sphi 0, %s64
    %s66 = sphi 0, %s64
    %s67 = sphi 0, %s66
    %s81 = sphi 0, %s67
    %s87 = sphi 0, %s89
    %s90 = sphi 0, %s87
    %s91 = sphi 0, %s90
    %s107 = sphi 0, %s91
  $region4: #{conv_block_pallas.1} parent=0 // loop_header_branch
    %12 = sbr.rel (%p10) target = $region8
  $region5: #{conv_block_pallas.1} parent=0 // loop_body
    %s14 = ssub.s32 %s9, 1
    %s15 = ssub.s32 %s9, 2
    %s16 = sadd.s32 %s9, 1
    %s17 = ssub.s32 %s9, %s16
    %p18 = scmp.eq.s32.totalorder %s17, 0
    %s20 = sadd.s32 %s19, 1
    %s21 = scalar_select %p18, %s19, %s20
    %p24 = pneg %p18
    %p25 = scmp.eq.s32.totalorder %s9, 1
    %p26 = por %p24, %p25
    %p27 = scmp.ne.s32.totalorder %s19, %s22
    %p28 = scmp.eq.s32.totalorder %s9, 0
    %p29 = por %p27, %p28
    %p30 = scmp.ne.s32.totalorder %s19, %s22
    %p31 = scmp.eq.s32.totalorder %s14, 1
    %p32 = por %p30, %p31
    %p33 = scmp.ne.s32.totalorder %s22, %s23
    %p34 = scmp.eq.s32.totalorder %s14, 0
    %p35 = por %p33, %p34
    %p36 = scmp.ne.s32.totalorder %s22, %s23
    %p37 = scmp.eq.s32.totalorder %s15, 1
    %p38 = por %p36, %p37
    %p40 = scmp.ne.s32.totalorder %s23, %s39
    %p41 = scmp.eq.s32.totalorder %s15, 0
    %p42 = por %p40, %p41
    %s44 = sadd.s32 %s43, 1
    %p47 = scmp.eq.s32.totalorder %s9, 1
    %p48 = scmp.ne.s32.totalorder %s43, %s45
    %p49 = scmp.eq.s32.totalorder %s9, 0
    %p50 = por %p48, %p49
    %p51 = scmp.ne.s32.totalorder %s43, %s45
    %p52 = scmp.eq.s32.totalorder %s14, 1
    %p53 = por %p51, %p52
    %p54 = scmp.ne.s32.totalorder %s45, %s46
    %p55 = scmp.eq.s32.totalorder %s14, 0
    %p56 = por %p54, %p55
    %p57 = scmp.ne.s32.totalorder %s45, %s46
    %p58 = scmp.eq.s32.totalorder %s15, 1
    %p59 = por %p57, %p58
    %p61 = scmp.ne.s32.totalorder %s46, %s60
    %p62 = scmp.eq.s32.totalorder %s15, 0
    %p63 = por %p61, %p62
    %s65 = sadd.s32 %s64, 1
    %p68 = scmp.eq.s32.totalorder %s9, 1
    %p69 = scmp.ne.s32.totalorder %s64, %s66
    %p70 = scmp.eq.s32.totalorder %s9, 0
    %p71 = por %p69, %p70
    %p72 = scmp.ne.s32.totalorder %s64, %s66
    %p73 = scmp.eq.s32.totalorder %s14, 1
    %p74 = por %p72, %p73
    %p75 = scmp.ne.s32.totalorder %s66, %s67
    %p76 = scmp.eq.s32.totalorder %s14, 0
    %p77 = por %p75, %p76
    %p78 = scmp.ne.s32.totalorder %s66, %s67
    %p79 = scmp.eq.s32.totalorder %s15, 1
    %p80 = por %p78, %p79
    %p82 = scmp.ne.s32.totalorder %s67, %s81
    %p83 = scmp.eq.s32.totalorder %s15, 0
    %p84 = por %p82, %p83
    %s85 = ssub.s32 %s9, %s16
    %p86 = scmp.eq.s32.totalorder %s85, 0
    %s88 = sadd.s32 %s87, 1
    %s89 = scalar_select %p86, %s87, %s88
    %p92 = pneg %p86
    %p93 = scmp.eq.s32.totalorder %s9, 1
    %p94 = por %p92, %p93
    %p95 = scmp.ne.s32.totalorder %s87, %s90
    %p96 = scmp.eq.s32.totalorder %s9, 0
    %p97 = por %p95, %p96
    %p98 = scmp.ne.s32.totalorder %s87, %s90
    %p99 = scmp.eq.s32.totalorder %s14, 1
    %p100 = por %p98, %p99
    %p101 = scmp.ne.s32.totalorder %s90, %s91
    %p102 = scmp.eq.s32.totalorder %s14, 0
    %p103 = por %p101, %p102
    %p104 = scmp.ne.s32.totalorder %s90, %s91
    %p105 = scmp.eq.s32.totalorder %s15, 1
    %p106 = por %p104, %p105
    %p108 = scmp.ne.s32.totalorder %s91, %s107
    %p109 = scmp.eq.s32.totalorder %s15, 0
    %p110 = por %p108, %p109
    %p111 = scmp.le.s32.totalorder 1, %s9
    %p112 = scmp.lt.s32.totalorder %s9, 3
    %p113 = pnand %p111, %p112
    %p114 = pneg %p113
    // Predicated region
    $region9: #{conv_block_pallas.1} parent=5 // pred_check
      _
    $region10: #{conv_block_pallas.1} parent=5 // pred_check_branch
      %116 = sbr.rel (%p113) target = $region12
    $region11: #{conv_block_pallas.1} parent=5 // pred_region
      %s117 = ssub.s32 %s9, 1
      // Predicated region
      $region13: #{conv_block_pallas.1} parent=11 // pred_check
        %p118 = pneg %p56
      $region14: #{conv_block_pallas.1} parent=11 // pred_check_branch
        %120 = sbr.rel (%p118) target = $region16
      $region15: #{conv_block_pallas.1} parent=11 // pred_region
        _
      $region16: #{conv_block_pallas.1} parent=11 // pred_fallthru
        _
      // Predicated region
      $region17: #{conv_block_pallas.1} parent=11 // pred_check
        %p121 = pneg %p77
      $region18: #{conv_block_pallas.1} parent=11 // pred_check_branch
        %123 = sbr.rel (%p121) target = $region20
      $region19: #{conv_block_pallas.1} parent=11 // pred_region
        _
      $region20: #{conv_block_pallas.1} parent=11 // pred_fallthru
        _
    $region12: #{conv_block_pallas.1} parent=5 // pred_fallthru
      _
    %p124 = scmp.lt.s32.totalorder %s9, 2
    // Predicated region
    $region21: #{conv_block_pallas.1} parent=5 // pred_check
      %p125 = pneg %p124
    $region22: #{conv_block_pallas.1} parent=5 // pred_check_branch
      %127 = sbr.rel (%p125) target = $region24
    $region23: #{conv_block_pallas.1} parent=5 // pred_region
      // Predicated region
      $region25: #{conv_block_pallas.1} parent=23 // pred_check
        %p128 = pneg %p29
      $region26: #{conv_block_pallas.1} parent=23 // pred_check_branch
        %130 = sbr.rel (%p128) target = $region28
      $region27: #{conv_block_pallas.1} parent=23 // pred_region
        %p131 = scmp.lt.s32.totalorder %s9, 1
        %s132 = scalar_select %p131, %s9, 1
        %s133 = smul.addr %s132, 2
        %s134 = smul.addr %s133, 4
        %s135 = scalar_lea.vmem %s0, %s134
      $region28: #{conv_block_pallas.1} parent=23 // pred_fallthru
        _
    $region24: #{conv_block_pallas.1} parent=5 // pred_fallthru
      _
    %p136 = scmp.le.s32.totalorder 1, %s9
    %p137 = scmp.lt.s32.totalorder %s9, 3
    %p138 = pnand %p136, %p137
    %p139 = pneg %p138
    // Predicated region
    $region29: #{conv_block_pallas.1} parent=5 // pred_check
      _
    $region30: #{conv_block_pallas.1} parent=5 // pred_check_branch
      %141 = sbr.rel (%p138) target = $region32
    $region31: #{conv_block_pallas.1} parent=5 // pred_region
      %s142 = ssub.s32 %s9, 1
      %p143 = scmp.lt.s32.totalorder %s14, 1
      %s144 = scalar_select %p143, %s14, 1
      %s145 = smul.addr %s144, 2
      %s146 = smul.addr %s145, 4
      %s147 = scalar_lea.vmem %s0, %s146
      %p148 = pneg %p35
      %p149 = pneg %p32
      %p150 = pneg %p56
      %p151 = pneg %p53
      %p152 = pneg %p77
      %p153 = pneg %p74
      %p154 = pneg %p103
      %p155 = pneg %p100
      %p156 = scmp.lt.s32.totalorder %s14, 1
      %s157 = scalar_select %p156, %s14, 1
      %s158 = smul.addr %s157, 2
      %s159 = smul.addr %s158, 8
      %s160 = scalar_lea.vmem %s3, %s159
      %p161 = scmp.lt.s32.totalorder %s14, 1
      %s162 = scalar_select %p161, %s14, 1
      %s163 = smul.addr %s162, 2
      %s164 = smul.addr %s163, 4
      %s165 = scalar_lea.vmem %s0, %s164
      %p166 = scmp.lt.s32.totalorder %s14, 1
      %s167 = scalar_select %p166, %s14, 1
      %s168 = smul.addr %s167, 2
      %s169 = smul.addr %s168, 8
      %s170 = scalar_lea.vmem %s3, %s169
      %v171 = vld [vmem:[%s165] sm:$0xff]
      %v172 = vld [vmem:[%s1] sm:$0xf]
      %v173 = vld [vmem:[%s2] sm:$0xff]
      %v174 = vlaneseq
      %v175 = vand.u32 %v174, 127
      %v176 = vadd.s32 %v175, 128
      %v177 = vand.u32 %v175, 15
      %v178 = vand.u32 %v176, 15
      %vm179 = vcmp.ne.s32.totalorder %v177, 0
      %vm180 = vcmp.ne.s32.totalorder %v178, 0
      %vm181 = vcmp.ne.s32.totalorder %v177, 15
      %vm182 = vcmp.ne.s32.totalorder %v178, 15
      %vm183 = vcmp.ge.s32.totalorder %v175, 16
      %vm184 = vcmp.ge.s32.totalorder %v176, 16
      %vm185 = vcmp.lt.s32.totalorder %v175, 240
      %vm186 = vcmp.lt.s32.totalorder %v176, 240
      %188 = vst [vmem:[#allocation1] ss:$2 sm:$0xff] %v171
      %v189 = vld.sshfl [vmem:[#allocation1] sm:$0xff pattern:$0x75316420]
      %v190 = vld.sshfl [vmem:[#allocation1 + $0x8] sm:$0xff pattern:$0x75316420]
      %193 = vrot.lane.b32.xlu0 %v189, 1
      %v194 = vpop.permute.xlu0 %193
      %195 = vrot.lane.b32.xlu0 %v190, 1
      %v196 = vpop.permute.xlu0 %195
      %vm197 = vcmp.lt.s32.totalorder %v175, 1
      %v198 = vsel %vm197, %v194, %v196
      %v199 = vsel %vm197, %v196, %v194
      %v200 = vsel %vm179, %v199, 0.0
      %v201 = vsel %vm180, %v198, 0.0
      %202 = vst [vmem:[#allocation1] ss:$2 sm:$0xff] %v171
      %v203 = vld.sshfl [vmem:[#allocation1] sm:$0xff pattern:$0x75316420]
      %v204 = vld.sshfl [vmem:[#allocation1 + $0x8] sm:$0xff pattern:$0x75316420]
      %207 = vrot.lane.b32.xlu0 %v203, 127
      %v208 = vpop.permute.xlu0 %207
      %209 = vrot.lane.b32.xlu0 %v204, 127
      %v210 = vpop.permute.xlu0 %209
      %vm211 = vcmp.lt.s32.totalorder %v175, 127
      %v212 = vsel %vm211, %v208, %v210
      %v213 = vsel %vm211, %v210, %v208
      %v214 = vsel %vm181, %v212, 0.0
      %v215 = vsel %vm182, %v213, 0.0
      %217 = vset.pattern.permute.xlu0 0
      %218 = vperm.xlu0 %217, %v172
      %v219 = vpop.permute.xlu0 %218
      %v221 = vmul.f32 %v219, %v200
      %v222 = vmul.f32 %v219, %v201
      %223 = vset.pattern.permute.xlu0 1
      %224 = vperm.xlu0 %223, %v172
      %v225 = vpop.permute.xlu0 %224
      %227 = vst [vmem:[#allocation1] ss:$2 sm:$0xff] %v171
      %v228 = vld.sshfl [vmem:[#allocation1] sm:$0xff pattern:$0x75316420]
      %v229 = vld.sshfl [vmem:[#allocation1 + $0x8] sm:$0xff pattern:$0x75316420]
      %v232 = vmul.f32 %v225, %v228
      %v233 = vmul.f32 %v225, %v229
      %v234 = vadd.f32 %v221, %v232
      %v235 = vadd.f32 %v222, %v233
      %236 = vset.pattern.permute.xlu0 2
      %237 = vperm.xlu0 %236, %v172
      %v238 = vpop.permute.xlu0 %237
      %v240 = vmul.f32 %v238, %v214
      %v241 = vmul.f32 %v238, %v215
      %v242 = vadd.f32 %v234, %v240
      %v243 = vadd.f32 %v235, %v241
      %244 = vset.pattern.permute.xlu0 3
      %245 = vperm.xlu0 %244, %v172
      %v246 = vpop.permute.xlu0 %245
      %v248 = vmul.f32 %v246, %v200
      %v249 = vmul.f32 %v246, %v201
      %250 = vset.pattern.permute.xlu0 4
      %251 = vperm.xlu0 %250, %v172
      %v252 = vpop.permute.xlu0 %251
      %254 = vst [vmem:[#allocation1] ss:$2 sm:$0xff] %v171
      %v255 = vld.sshfl [vmem:[#allocation1] sm:$0xff pattern:$0x75316420]
      %v256 = vld.sshfl [vmem:[#allocation1 + $0x8] sm:$0xff pattern:$0x75316420]
      %v259 = vmul.f32 %v252, %v255
      %v260 = vmul.f32 %v252, %v256
      %v261 = vadd.f32 %v248, %v259
      %v262 = vadd.f32 %v249, %v260
      %263 = vset.pattern.permute.xlu0 5
      %264 = vperm.xlu0 %263, %v172
      %v265 = vpop.permute.xlu0 %264
      %v267 = vmul.f32 %v265, %v214
      %v268 = vmul.f32 %v265, %v215
      %v269 = vadd.f32 %v261, %v267
      %v270 = vadd.f32 %v262, %v268
      %271 = vset.pattern.permute.xlu0 6
      %272 = vperm.xlu0 %271, %v172
      %v273 = vpop.permute.xlu0 %272
      %v275 = vmul.f32 %v273, %v200
      %v276 = vmul.f32 %v273, %v201
      %277 = vset.pattern.permute.xlu0 7
      %278 = vperm.xlu0 %277, %v172
      %v279 = vpop.permute.xlu0 %278
      %281 = vst [vmem:[#allocation1] ss:$2 sm:$0xff] %v171
      %v282 = vld.sshfl [vmem:[#allocation1] sm:$0xff pattern:$0x75316420]
      %v283 = vld.sshfl [vmem:[#allocation1 + $0x8] sm:$0xff pattern:$0x75316420]
      %v286 = vmul.f32 %v279, %v282
      %v287 = vmul.f32 %v279, %v283
      %v288 = vadd.f32 %v275, %v286
      %v289 = vadd.f32 %v276, %v287
      %290 = vset.pattern.permute.xlu0 8
      %291 = vperm.xlu0 %290, %v172
      %v292 = vpop.permute.xlu0 %291
      %v294 = vmul.f32 %v292, %v214
      %v295 = vmul.f32 %v292, %v215
      %v296 = vadd.f32 %v288, %v294
      %v297 = vadd.f32 %v289, %v295
      %298 = vrot.lane.b32.xlu0 %v242, 16
      %v299 = vpop.permute.xlu0 %298
      %300 = vrot.lane.b32.xlu0 %v243, 16
      %v301 = vpop.permute.xlu0 %300
      %vm302 = vcmp.lt.s32.totalorder %v175, 16
      %v303 = vsel %vm302, %v299, %v301
      %v304 = vsel %vm302, %v301, %v299
      %v305 = vsel %vm183, %v304, 0.0
      %v306 = vsel %vm184, %v303, 0.0
      %v307 = vadd.f32 %v269, %v305
      %v308 = vadd.f32 %v270, %v306
      %309 = vrot.lane.b32.xlu0 %v296, 112
      %v310 = vpop.permute.xlu0 %309
      %311 = vrot.lane.b32.xlu0 %v297, 112
      %v312 = vpop.permute.xlu0 %311
      %vm313 = vcmp.lt.s32.totalorder %v175, 112
      %v314 = vsel %vm313, %v310, %v312
      %v315 = vsel %vm313, %v312, %v310
      %v316 = vsel %vm185, %v314, 0.0
      %v317 = vsel %vm186, %v315, 0.0
      %v318 = vadd.f32 %v307, %v316
      %v319 = vadd.f32 %v308, %v317
      %v320 = vmul.f32 %v318, 0.01
      %v321 = vmul.f32 %v319, 0.01
      %v322 = vmax.f32 %v318, %v320
      %v323 = vmax.f32 %v319, %v321
      %v324 = vperm.slane %v322, 0
      %v325 = vperm.slane %v323, 0
      %327 = vset.pattern.permute.xlu0 0
      %328 = vperm.xlu0 %327, %v173
      %v329 = vpop.permute.xlu0 %328
      %v331 = vmul.f32 %v329, %v324
      %v332 = vmul.f32 %v329, %v325
      %v333 = vperm.slane %v322, 1
      %v334 = vperm.slane %v323, 1
      %335 = vset.pattern.permute.xlu0 1
      %336 = vperm.xlu0 %335, %v173
      %v337 = vpop.permute.xlu0 %336
      %v339 = vmul.f32 %v337, %v333
      %v340 = vmul.f32 %v337, %v334
      %v341 = vadd.f32 %v331, %v339
      %v342 = vadd.f32 %v332, %v340
      %v343 = vperm.slane %v322, 2
      %v344 = vperm.slane %v323, 2
      %345 = vset.pattern.permute.xlu0 2
      %346 = vperm.xlu0 %345, %v173
      %v347 = vpop.permute.xlu0 %346
      %v349 = vmul.f32 %v347, %v343
      %v350 = vmul.f32 %v347, %v344
      %v351 = vadd.f32 %v341, %v349
      %v352 = vadd.f32 %v342, %v350
      %v353 = vperm.slane %v322, 3
      %v354 = vperm.slane %v323, 3
      %355 = vset.pattern.permute.xlu0 3
      %356 = vperm.xlu0 %355, %v173
      %v357 = vpop.permute.xlu0 %356
      %v359 = vmul.f32 %v357, %v353
      %v360 = vmul.f32 %v357, %v354
      %v361 = vadd.f32 %v351, %v359
      %v362 = vadd.f32 %v352, %v360
      %v363 = vmul.f32 %v361, 0.01
      %v364 = vmul.f32 %v362, 0.01
      %v365 = vmax.f32 %v361, %v363
      %v366 = vmax.f32 %v362, %v364
      %367 = vst [vmem:[%s170] sm:$0xff] %v365
      %368 = vst [vmem:[%s170 + $0x8] sm:$0xff] %v366
      %p369 = scmp.lt.s32.totalorder %s14, 1
      %s370 = scalar_select %p369, %s14, 1
      %s371 = smul.addr %s370, 2
      %s372 = smul.addr %s371, 8
      %s373 = scalar_lea.vmem %s3, %s372
      // Predicated region
      $region33: #{conv_block_pallas.1} parent=31 // pred_check
        %p374 = pneg %p100
      $region34: #{conv_block_pallas.1} parent=31 // pred_check_branch
        %376 = sbr.rel (%p374) target = $region36
      $region35: #{conv_block_pallas.1} parent=31 // pred_region
        _
      $region36: #{conv_block_pallas.1} parent=31 // pred_fallthru
        _
    $region32: #{conv_block_pallas.1} parent=5 // pred_fallthru
      _
    %p377 = scmp.le.s32.totalorder 2, %s9
    // Predicated region
    $region37: #{conv_block_pallas.1} parent=5 // pred_check
      %p378 = pneg %p377
    $region38: #{conv_block_pallas.1} parent=5 // pred_check_branch
      %380 = sbr.rel (%p378) target = $region40
    $region39: #{conv_block_pallas.1} parent=5 // pred_region
      %s381 = ssub.s32 %s9, 2
      // Predicated region
      $region41: #{conv_block_pallas.1} parent=39 // pred_check
        %p382 = pneg %p106
      $region42: #{conv_block_pallas.1} parent=39 // pred_check_branch
        %384 = sbr.rel (%p382) target = $region44
      $region43: #{conv_block_pallas.1} parent=39 // pred_region
        %p385 = scmp.lt.s32.totalorder %s15, 1
        %s386 = scalar_select %p385, %s15, 1
        %s387 = smul.addr %s386, 2
        %s388 = smul.addr %s387, 8
        %s389 = scalar_lea.vmem %s3, %s388
      $region44: #{conv_block_pallas.1} parent=39 // pred_fallthru
        _
    $region40: #{conv_block_pallas.1} parent=5 // pred_fallthru
      _
  $region6: #{conv_block_pallas.1} parent=0 // loop_footer
    %s13 = sadd.s32 1, %s9
  $region7: #{conv_block_pallas.1} parent=0 // loop_footer_branch
    %8 = sbr.rel target = $region3
  $region8: #{conv_block_pallas.1} parent=0 // loop_exit
    _

</llo_original>
